<compile_context>
chip_gen: v5e
topology: v5e:2x2
jax: 0.10.0
libtpu: 0.0.40
codegen_flags: <defaults>
</compile_context>

<pallas_src>
import functools

import jax
import jax.numpy as jnp
import numpy as np
from jax.experimental import pallas as pl
from jax.experimental.pallas import tpu as pltpu

LOG2 = float(np.log(2.0))
OUT_SLAB = 128  # lane-dense output width


def _ssp(x):  # ShiftedSoftplus
    return jax.nn.softplus(x) - LOG2


# --------------------------- fused Pallas kernel -----------------------------

def _fused_kernel(q0T_ref, pposT_ref, pfeat_ref, lposT_ref, lfeat_ref,
                  wp1_ref, bp1_ref, wp2_ref, bp2_ref,
                  wc1t_ref, bc1_ref, wc2_ref, bc2_ref,
                  out_ref, rows_ref, ctx_ref, *, k, out_width):
    f32 = jnp.float32
    pposT = pposT_ref[...]            # (3, Np)  atoms lane-dense
    pfeat = pfeat_ref[...]            # (Np, Dp)
    lposT = lposT_ref[...]            # (3, Nl)
    lfeat = lfeat_ref[...]            # (Nl, Dl)
    q0T = q0T_ref[...]                # (3, 1)

    Np = pposT.shape[1]
    Dp = pfeat.shape[1]
    Dl = lfeat.shape[1]
    H = wc2_ref.shape[0]
    C = wc2_ref.shape[1]

    # ---------- geometry on the VPU (coords on sublanes, atoms on lanes) -----
    centroid = jnp.mean(lposT, axis=1, keepdims=True)               # (3, 1)
    dc = pposT - centroid
    d2_cent = jnp.sum(dc * dc, axis=0, keepdims=True)               # (1, Np)

    dq = pposT - q0T
    d2_q = jnp.sum(dq * dq, axis=0, keepdims=True)                  # (1, Np)

    # spatial weights 1/(d^2 + 1), normalized (both divides on the EUP)
    w = pl.reciprocal(d2_q + 1.0, approx=True)
    w = w * pl.reciprocal(jnp.sum(w, axis=1, keepdims=True), approx=True)

    # ---------- k-NN to the ligand centroid: k-step masked argmin ------------
    lane = jax.lax.broadcasted_iota(jnp.int32, (1, Np), 1)
    masked = d2_cent
    knn_mask = jnp.zeros((1, Np), f32)
    for _ in range(k):                                              # k tiny & static
        m = jnp.min(masked, axis=1, keepdims=True)
        idx = jnp.min(jnp.where(masked <= m, lane, Np), axis=1, keepdims=True)
        onehot = (lane == idx).astype(f32)
        knn_mask = knn_mask + onehot
        masked = jnp.where(onehot > 0.0, jnp.inf, masked)

    # ---------- one MXU pass: row0 = kNN mean, row1 = spatial aggregation ----
    rows_ref[0:1, :] = knn_mask * (1.0 / k)
    rows_ref[1:2, :] = w
    feats = jnp.dot(rows_ref[...], pfeat, preferred_element_type=f32)  # (2, Dp)

    lmean = jnp.mean(lfeat, axis=0, keepdims=True)                  # (1, Dl)

    # ctx2 = [knn_mean | ligand_mean | spatial_agg], assembled in VMEM scratch
    ctx_ref[:, 0:Dp] = feats[0:1, :]
    ctx_ref[:, Dp:Dp + Dl] = lmean
    ctx_ref[:, Dp + Dl:Dp + Dl + Dp] = feats[1:2, :]
    ctx2 = ctx_ref[...]                                             # (1, 2*Dp+Dl)

    # ---------- packed dense stage 1: [a1 | t1 | spat_h] ---------------------
    h1 = jnp.dot(ctx2, wp1_ref[...], preferred_element_type=f32) + bp1_ref[...]
    lane_h1 = jax.lax.broadcasted_iota(jnp.int32, h1.shape, 1)
    h1 = jnp.where(lane_h1 < 2 * H, _ssp(h1), h1)   # spat_h stays linear

    # ---------- packed dense stage 2: [agg_h | spat_h@wc1_bot | term_logit] --
    h2 = jnp.dot(h1, wp2_ref[...], preferred_element_type=f32) + bp2_ref[...]
    agg_h = h2[:, 0:H]
    spat_contrib = h2[:, H:2 * H]
    term_logit = h2[:, 2 * H:2 * H + 1]

    # ---------- classifier + softmax ------------------------------------------
    c1 = _ssp(jnp.dot(agg_h, wc1t_ref[...], preferred_element_type=f32)
              + spat_contrib + bc1_ref[...])
    logits = jnp.dot(c1, wc2_ref[...], preferred_element_type=f32) + bc2_ref[...]
    logits = logits - jnp.max(logits, axis=1, keepdims=True)
    e = jnp.exp(logits)
    atom = e * pl.reciprocal(jnp.sum(e, axis=1, keepdims=True), approx=True)

    term = jax.nn.sigmoid(term_logit)

    # ---------- single lane-padded output slab [atom(C) | term(1) | pad] -----
    out_ref[...] = jnp.zeros((1, out_width), f32)
    out_ref[:, 0:C] = atom
    out_ref[:, C:C + 1] = term


# --------------------------- weight packing & wrapper ------------------------

def pack_params(params):
    """Pre-pack weights so the M=1 activations hit the MXU fewer times."""
    f32 = jnp.float32
    H = params["b1"].shape[1]
    Din = params["w1"].shape[0]        # Dp + Dl
    Dp = params["ws"].shape[0]

    # stage-1: ctx2 (1, Dp+Dl+Dp) -> [a1(H) | t1(H) | spat_h(H)]
    wp1 = jnp.zeros((Din + Dp, 3 * H), f32)
    wp1 = wp1.at[0:Din, 0:H].set(params["w1"])
    wp1 = wp1.at[0:Din, H:2 * H].set(params["wt1"])
    wp1 = wp1.at[Din:Din + Dp, 2 * H:3 * H].set(params["ws"])
    bp1 = jnp.concatenate([params["b1"], params["bt1"], params["bs"]], axis=1)

    # stage-2: [ssp(a1)|ssp(t1)|spat_h] -> [agg_h(H) | spat_h@wc1_bot(H) | term_logit(1)]
    wc1_top = params["wc1"][0:H, :]
    wc1_bot = params["wc1"][H:2 * H, :]
    wp2 = jnp.zeros((3 * H, 2 * H + 1), f32)
    wp2 = wp2.at[0:H, 0:H].set(params["w2"])
    wp2 = wp2.at[2 * H:3 * H, H:2 * H].set(wc1_bot)
    wp2 = wp2.at[H:2 * H, 2 * H:2 * H + 1].set(params["wt2"])
    bp2 = jnp.concatenate(
        [params["b2"], jnp.zeros((1, H), f32), params["bt2"]], axis=1)

    return {"wp1": wp1, "bp1": bp1, "wp2": wp2, "bp2": bp2,
            "wc1_top": wc1_top, "bc1": params["bc1"],
            "wc2": params["wc2"], "bc2": params["bc2"]}


def type_predictor_forward(packed, pos_query, protein_pos, protein_feat,
                           ligand_pos, ligand_feat, *, aggregate_k=5):
    f32 = jnp.float32
    Np, Dp = protein_feat.shape
    Nl, Dl = ligand_feat.shape
    C = packed["bc2"].shape[1]

    # Wrapper-side layout plumbing: atoms lane-dense for the in-kernel VPU
    # distance math; only query row 0 is consumed downstream.
    q0T = jnp.transpose(pos_query[0:1, :])       # (3, 1)
    pposT = jnp.transpose(protein_pos)           # (3, Np)
    lposT = jnp.transpose(ligand_pos)            # (3, Nl)

    kernel = functools.partial(_fused_kernel, k=aggregate_k, out_width=OUT_SLAB)
    out = pl.pallas_call(
        kernel,
        out_shape=jax.ShapeDtypeStruct((1, OUT_SLAB), f32),
        scratch_shapes=[pltpu.VMEM((2, Np), f32),
                        pltpu.VMEM((1, 2 * Dp + Dl), f32)],
    )(q0T, pposT, protein_feat, lposT, ligand_feat,
      packed["wp1"], packed["bp1"], packed["wp2"], packed["bp2"],
      packed["wc1_top"], packed["bc1"], packed["wc2"], packed["bc2"])

    atom_type = out[0, 0:C]          # (C,)
    terminate = out[0, C:C + 1]      # (1,)
    return atom_type, terminate


# --------------------------- params & reference ------------------------------

def init_params(key, num_classes, hidden, Dp, Dl):
    dims = {
        "w1": (Dp + Dl, hidden), "b1": (1, hidden),
        "w2": (hidden, hidden), "b2": (1, hidden),
        "ws": (Dp, hidden), "bs": (1, hidden),
        "wc1": (2 * hidden, hidden), "bc1": (1, hidden),
        "wc2": (hidden, num_classes), "bc2": (1, num_classes),
        "wt1": (Dp + Dl, hidden), "bt1": (1, hidden),
        "wt2": (hidden, 1), "bt2": (1, 1),
    }
    params = {}
    keys = jax.random.split(key, len(dims))
    for k_, (name, shape) in zip(keys, dims.items()):
        scale = 1.0 / np.sqrt(shape[0])
        params[name] = scale * jax.random.normal(k_, shape, jnp.float32)
    return params


def reference_forward(params, pos_query, protein_pos, protein_feat,
                      ligand_pos, ligand_feat, aggregate_k=5):
    """Pure-JAX reference (same semantics, no Pallas)."""
    centroid = jnp.mean(ligand_pos, axis=0)
    d2 = jnp.sum((protein_pos - centroid) ** 2, axis=1)
    _, idx = jax.lax.top_k(-d2, aggregate_k)
    ctx = jnp.concatenate([jnp.mean(protein_feat[idx], axis=0),
                           jnp.mean(ligand_feat, axis=0)])                 # (Dp+Dl,)
    a1 = _ssp(ctx @ params["w1"] + params["b1"][0])
    agg_h = a1 @ params["w2"] + params["b2"][0]                            # (H,)

    dist2 = jnp.sum((pos_query[:, None, :] - protein_pos[None, :, :]) ** 2, axis=-1)
    w = 1.0 / (dist2 + 1.0)
    w = w / jnp.sum(w, axis=1, keepdims=True)
    spat = w @ protein_feat                                                # (Nq, Dp)
    spat_h = spat @ params["ws"] + params["bs"]                            # (Nq, H)

    h = jnp.concatenate([agg_h, spat_h[0]])                                # (2H,)
    c1 = _ssp(h @ params["wc1"] + params["bc1"][0])
    logits = c1 @ params["wc2"] + params["bc2"][0]
    atom = jax.nn.softmax(logits, axis=0)                                  # (C,)

    t1 = _ssp(ctx @ params["wt1"] + params["bt1"][0])
    term = jax.nn.sigmoid(t1 @ params["wt2"] + params["bt2"][0])           # (1,)
    return atom, term


if __name__ == "__main__":
    num_classes, hidden = 8, 32
    Dp, Dl = 16, 16
    Nq, Np, Nl = 4, 16, 8

    key = jax.random.PRNGKey(0)
    kp, kd = jax.random.split(key)
    params = init_params(kp, num_classes, hidden, Dp, Dl)
    packed = pack_params(params)
    ks = jax.random.split(kd, 5)
    pos_query = jax.random.normal(ks[0], (Nq, 3), jnp.float32)
    protein_pos = jax.random.normal(ks[1], (Np, 3), jnp.float32)
    protein_feat = jax.random.normal(ks[2], (Np, Dp), jnp.float32)
    ligand_pos = jax.random.normal(ks[3], (Nl, 3), jnp.float32)
    ligand_feat = jax.random.normal(ks[4], (Nl, Dl), jnp.float32)

    atom_type, terminate = type_predictor_forward(
        packed, pos_query, protein_pos, protein_feat, ligand_pos, ligand_feat)
    jax.block_until_ready((atom_type, terminate))

    ref_atom, ref_term = reference_forward(
        params, pos_query, protein_pos, protein_feat, ligand_pos, ligand_feat)
    # slightly relaxed tolerances because the kernel routes divides through the
    # EUP approximate reciprocal (pl.reciprocal(approx=True)).
    np.testing.assert_allclose(np.asarray(atom_type), np.asarray(ref_atom),
                               rtol=2e-2, atol=2e-3)
    np.testing.assert_allclose(np.asarray(terminate), np.asarray(ref_term),
                               rtol=2e-2, atol=2e-3)

    print("KERNEL_OK")
</pallas_src>

<mosaic_0001>
module attributes {stable_mosaic.version = 11 : i64} {
  func.func @_fused_kernel(%arg0: memref<3x1xf32, #tpu.memory_space<vmem>>, %arg1: memref<3x16xf32, #tpu.memory_space<vmem>>, %arg2: memref<16x16xf32, #tpu.memory_space<vmem>>, %arg3: memref<3x8xf32, #tpu.memory_space<vmem>>, %arg4: memref<8x16xf32, #tpu.memory_space<vmem>>, %arg5: memref<48x96xf32, #tpu.memory_space<vmem>>, %arg6: memref<1x96xf32, #tpu.memory_space<vmem>>, %arg7: memref<96x65xf32, #tpu.memory_space<vmem>>, %arg8: memref<1x65xf32, #tpu.memory_space<vmem>>, %arg9: memref<32x32xf32, #tpu.memory_space<vmem>>, %arg10: memref<1x32xf32, #tpu.memory_space<vmem>>, %arg11: memref<32x8xf32, #tpu.memory_space<vmem>>, %arg12: memref<1x8xf32, #tpu.memory_space<vmem>>, %arg13: memref<1x128xf32, #tpu.memory_space<vmem>>, %arg14: memref<2x16xf32, #tpu.memory_space<vmem>>, %arg15: memref<1x48xf32, #tpu.memory_space<vmem>>) attributes {dimension_semantics = [], scalar_prefetch = 0 : i64, scratch_operands = 2 : i64, tpu.core_type = #tpu.core_type<tc>} {
    %c0 = arith.constant 0 : index
    %c0_0 = arith.constant 0 : index
    %0 = vector.load %arg1[%c0, %c0_0] : memref<3x16xf32, #tpu.memory_space<vmem>>, vector<3x16xf32>
    %c0_1 = arith.constant 0 : index
    %c0_2 = arith.constant 0 : index
    %1 = vector.load %arg2[%c0_1, %c0_2] : memref<16x16xf32, #tpu.memory_space<vmem>>, vector<16x16xf32>
    %c0_3 = arith.constant 0 : index
    %c0_4 = arith.constant 0 : index
    %2 = vector.load %arg3[%c0_3, %c0_4] : memref<3x8xf32, #tpu.memory_space<vmem>>, vector<3x8xf32>
    %c0_5 = arith.constant 0 : index
    %c0_6 = arith.constant 0 : index
    %3 = vector.load %arg4[%c0_5, %c0_6] : memref<8x16xf32, #tpu.memory_space<vmem>>, vector<8x16xf32>
    %c0_7 = arith.constant 0 : index
    %c0_8 = arith.constant 0 : index
    %4 = vector.load %arg0[%c0_7, %c0_8] : memref<3x1xf32, #tpu.memory_space<vmem>>, vector<3x1xf32>
    %cst = arith.constant dense<0.000000e+00> : vector<3xf32>
    %5 = vector.multi_reduction <add>, %2, %cst [1] : vector<3x8xf32> to vector<3xf32>
    %6 = vector.shape_cast %5 : vector<3xf32> to vector<3x1xf32>
    %cst_9 = arith.constant 8.000000e+00 : f32
    %7 = vector.broadcast %cst_9 : f32 to vector<3x1xf32>
    %8 = arith.divf %6, %7 : vector<3x1xf32>
    %9 = vector.broadcast %8 : vector<3x1xf32> to vector<3x16xf32>
    %10 = arith.subf %0, %9 : vector<3x16xf32>
    %11 = arith.mulf %10, %10 : vector<3x16xf32>
    %cst_10 = arith.constant dense<0.000000e+00> : vector<16xf32>
    %12 = vector.multi_reduction <add>, %11, %cst_10 [0] : vector<3x16xf32> to vector<16xf32>
    %13 = vector.shape_cast %12 : vector<16xf32> to vector<1x16xf32>
    %14 = vector.broadcast %4 : vector<3x1xf32> to vector<3x16xf32>
    %15 = arith.subf %0, %14 : vector<3x16xf32>
    %16 = arith.mulf %15, %15 : vector<3x16xf32>
    %cst_11 = arith.constant dense<0.000000e+00> : vector<16xf32>
    %17 = vector.multi_reduction <add>, %16, %cst_11 [0] : vector<3x16xf32> to vector<16xf32>
    %18 = vector.shape_cast %17 : vector<16xf32> to vector<1x16xf32>
    %cst_12 = arith.constant 1.000000e+00 : f32
    %19 = vector.broadcast %cst_12 : f32 to vector<1x16xf32>
    %20 = arith.addf %18, %19 : vector<1x16xf32>
    %21 = tpu.reciprocal %20 {approx = true} : vector<1x16xf32> -> vector<1x16xf32>
    %cst_13 = arith.constant dense<0.000000e+00> : vector<1xf32>
    %22 = vector.multi_reduction <add>, %21, %cst_13 [1] : vector<1x16xf32> to vector<1xf32>
    %23 = vector.shape_cast %22 : vector<1xf32> to vector<1x1xf32>
    %24 = tpu.reciprocal %23 {approx = true} : vector<1x1xf32> -> vector<1x1xf32>
    %25 = vector.broadcast %24 : vector<1x1xf32> to vector<1x16xf32>
    %26 = arith.mulf %21, %25 : vector<1x16xf32>
    %27 = tpu.iota {dimensions = array<i32: 1>} : vector<1x16xi32>
    %cst_14 = arith.constant 0.000000e+00 : f32
    %28 = vector.broadcast %cst_14 : f32 to vector<1x16xf32>
    %cst_15 = arith.constant dense<0x7F800000> : vector<1xf32>
    %29 = vector.multi_reduction <minimumf>, %13, %cst_15 [1] : vector<1x16xf32> to vector<1xf32>
    %30 = vector.shape_cast %29 : vector<1xf32> to vector<1x1xf32>
    %31 = vector.broadcast %30 : vector<1x1xf32> to vector<1x16xf32>
    %32 = arith.cmpf ole, %13, %31 : vector<1x16xf32>
    %c16_i32 = arith.constant 16 : i32
    %33 = vector.broadcast %c16_i32 : i32 to vector<1x16xi32>
    %34 = arith.select %32, %27, %33 : vector<1x16xi1>, vector<1x16xi32>
    %cst_16 = arith.constant dense<2147483647> : vector<1xi32>
    %35 = vector.multi_reduction <minsi>, %34, %cst_16 [1] : vector<1x16xi32> to vector<1xi32>
    %36 = vector.shape_cast %35 : vector<1xi32> to vector<1x1xi32>
    %37 = vector.broadcast %36 : vector<1x1xi32> to vector<1x16xi32>
    %38 = arith.cmpi eq, %27, %37 : vector<1x16xi32>
    %39 = arith.extui %38 : vector<1x16xi1> to vector<1x16xi32>
    %40 = arith.sitofp %39 : vector<1x16xi32> to vector<1x16xf32>
    %41 = arith.addf %28, %40 : vector<1x16xf32>
    %cst_17 = arith.constant 0.000000e+00 : f32
    %42 = vector.broadcast %cst_17 : f32 to vector<1x16xf32>
    %43 = arith.cmpf ogt, %40, %42 : vector<1x16xf32>
    %cst_18 = arith.constant 0x7F800000 : f32
    %44 = vector.broadcast %cst_18 : f32 to vector<1x16xf32>
    %45 = arith.select %43, %44, %13 : vector<1x16xi1>, vector<1x16xf32>
    %cst_19 = arith.constant dense<0x7F800000> : vector<1xf32>
    %46 = vector.multi_reduction <minimumf>, %45, %cst_19 [1] : vector<1x16xf32> to vector<1xf32>
    %47 = vector.shape_cast %46 : vector<1xf32> to vector<1x1xf32>
    %48 = vector.broadcast %47 : vector<1x1xf32> to vector<1x16xf32>
    %49 = arith.cmpf ole, %45, %48 : vector<1x16xf32>
    %c16_i32_20 = arith.constant 16 : i32
    %50 = vector.broadcast %c16_i32_20 : i32 to vector<1x16xi32>
    %51 = arith.select %49, %27, %50 : vector<1x16xi1>, vector<1x16xi32>
    %cst_21 = arith.constant dense<2147483647> : vector<1xi32>
    %52 = vector.multi_reduction <minsi>, %51, %cst_21 [1] : vector<1x16xi32> to vector<1xi32>
    %53 = vector.shape_cast %52 : vector<1xi32> to vector<1x1xi32>
    %54 = vector.broadcast %53 : vector<1x1xi32> to vector<1x16xi32>
    %55 = arith.cmpi eq, %27, %54 : vector<1x16xi32>
    %56 = arith.extui %55 : vector<1x16xi1> to vector<1x16xi32>
    %57 = arith.sitofp %56 : vector<1x16xi32> to vector<1x16xf32>
    %58 = arith.addf %41, %57 : vector<1x16xf32>
    %cst_22 = arith.constant 0.000000e+00 : f32
    %59 = vector.broadcast %cst_22 : f32 to vector<1x16xf32>
    %60 = arith.cmpf ogt, %57, %59 : vector<1x16xf32>
    %cst_23 = arith.constant 0x7F800000 : f32
    %61 = vector.broadcast %cst_23 : f32 to vector<1x16xf32>
    %62 = arith.select %60, %61, %45 : vector<1x16xi1>, vector<1x16xf32>
    %cst_24 = arith.constant dense<0x7F800000> : vector<1xf32>
    %63 = vector.multi_reduction <minimumf>, %62, %cst_24 [1] : vector<1x16xf32> to vector<1xf32>
    %64 = vector.shape_cast %63 : vector<1xf32> to vector<1x1xf32>
    %65 = vector.broadcast %64 : vector<1x1xf32> to vector<1x16xf32>
    %66 = arith.cmpf ole, %62, %65 : vector<1x16xf32>
    %c16_i32_25 = arith.constant 16 : i32
    %67 = vector.broadcast %c16_i32_25 : i32 to vector<1x16xi32>
    %68 = arith.select %66, %27, %67 : vector<1x16xi1>, vector<1x16xi32>
    %cst_26 = arith.constant dense<2147483647> : vector<1xi32>
    %69 = vector.multi_reduction <minsi>, %68, %cst_26 [1] : vector<1x16xi32> to vector<1xi32>
    %70 = vector.shape_cast %69 : vector<1xi32> to vector<1x1xi32>
    %71 = vector.broadcast %70 : vector<1x1xi32> to vector<1x16xi32>
    %72 = arith.cmpi eq, %27, %71 : vector<1x16xi32>
    %73 = arith.extui %72 : vector<1x16xi1> to vector<1x16xi32>
    %74 = arith.sitofp %73 : vector<1x16xi32> to vector<1x16xf32>
    %75 = arith.addf %58, %74 : vector<1x16xf32>
    %cst_27 = arith.constant 0.000000e+00 : f32
    %76 = vector.broadcast %cst_27 : f32 to vector<1x16xf32>
    %77 = arith.cmpf ogt, %74, %76 : vector<1x16xf32>
    %cst_28 = arith.constant 0x7F800000 : f32
    %78 = vector.broadcast %cst_28 : f32 to vector<1x16xf32>
    %79 = arith.select %77, %78, %62 : vector<1x16xi1>, vector<1x16xf32>
    %cst_29 = arith.constant dense<0x7F800000> : vector<1xf32>
    %80 = vector.multi_reduction <minimumf>, %79, %cst_29 [1] : vector<1x16xf32> to vector<1xf32>
    %81 = vector.shape_cast %80 : vector<1xf32> to vector<1x1xf32>
    %82 = vector.broadcast %81 : vector<1x1xf32> to vector<1x16xf32>
    %83 = arith.cmpf ole, %79, %82 : vector<1x16xf32>
    %c16_i32_30 = arith.constant 16 : i32
    %84 = vector.broadcast %c16_i32_30 : i32 to vector<1x16xi32>
    %85 = arith.select %83, %27, %84 : vector<1x16xi1>, vector<1x16xi32>
    %cst_31 = arith.constant dense<2147483647> : vector<1xi32>
    %86 = vector.multi_reduction <minsi>, %85, %cst_31 [1] : vector<1x16xi32> to vector<1xi32>
    %87 = vector.shape_cast %86 : vector<1xi32> to vector<1x1xi32>
    %88 = vector.broadcast %87 : vector<1x1xi32> to vector<1x16xi32>
    %89 = arith.cmpi eq, %27, %88 : vector<1x16xi32>
    %90 = arith.extui %89 : vector<1x16xi1> to vector<1x16xi32>
    %91 = arith.sitofp %90 : vector<1x16xi32> to vector<1x16xf32>
    %92 = arith.addf %75, %91 : vector<1x16xf32>
    %cst_32 = arith.constant 0.000000e+00 : f32
    %93 = vector.broadcast %cst_32 : f32 to vector<1x16xf32>
    %94 = arith.cmpf ogt, %91, %93 : vector<1x16xf32>
    %cst_33 = arith.constant 0x7F800000 : f32
    %95 = vector.broadcast %cst_33 : f32 to vector<1x16xf32>
    %96 = arith.select %94, %95, %79 : vector<1x16xi1>, vector<1x16xf32>
    %cst_34 = arith.constant dense<0x7F800000> : vector<1xf32>
    %97 = vector.multi_reduction <minimumf>, %96, %cst_34 [1] : vector<1x16xf32> to vector<1xf32>
    %98 = vector.shape_cast %97 : vector<1xf32> to vector<1x1xf32>
    %99 = vector.broadcast %98 : vector<1x1xf32> to vector<1x16xf32>
    %100 = arith.cmpf ole, %96, %99 : vector<1x16xf32>
    %c16_i32_35 = arith.constant 16 : i32
    %101 = vector.broadcast %c16_i32_35 : i32 to vector<1x16xi32>
    %102 = arith.select %100, %27, %101 : vector<1x16xi1>, vector<1x16xi32>
    %cst_36 = arith.constant dense<2147483647> : vector<1xi32>
    %103 = vector.multi_reduction <minsi>, %102, %cst_36 [1] : vector<1x16xi32> to vector<1xi32>
    %104 = vector.shape_cast %103 : vector<1xi32> to vector<1x1xi32>
    %105 = vector.broadcast %104 : vector<1x1xi32> to vector<1x16xi32>
    %106 = arith.cmpi eq, %27, %105 : vector<1x16xi32>
    %107 = arith.extui %106 : vector<1x16xi1> to vector<1x16xi32>
    %108 = arith.sitofp %107 : vector<1x16xi32> to vector<1x16xf32>
    %109 = arith.addf %92, %108 : vector<1x16xf32>
    %cst_37 = arith.constant 2.000000e-01 : f32
    %110 = vector.broadcast %cst_37 : f32 to vector<1x16xf32>
    %111 = arith.mulf %109, %110 : vector<1x16xf32>
    %c0_38 = arith.constant 0 : index
    %c0_39 = arith.constant 0 : index
    %112 = vector.load %arg14[%c0_38, %c0_39] : memref<2x16xf32, #tpu.memory_space<vmem>>, vector<1x16xf32>
    tpu.vector_store %arg14[%c0_38, %c0_39], %111 {strides = array<i32>} : memref<2x16xf32, #tpu.memory_space<vmem>>, vector<1x16xf32>,
    %c1 = arith.constant 1 : index
    %c0_40 = arith.constant 0 : index
    %113 = vector.load %arg14[%c1, %c0_40] : memref<2x16xf32, #tpu.memory_space<vmem>>, vector<1x16xf32>
    tpu.vector_store %arg14[%c1, %c0_40], %26 {strides = array<i32>} : memref<2x16xf32, #tpu.memory_space<vmem>>, vector<1x16xf32>,
    %c0_41 = arith.constant 0 : index
    %c0_42 = arith.constant 0 : index
    %114 = vector.load %arg14[%c0_41, %c0_42] : memref<2x16xf32, #tpu.memory_space<vmem>>, vector<2x16xf32>
    %cst_43 = arith.constant dense<0.000000e+00> : vector<2x16xf32>
    %115 = tpu.matmul %114, %1, %cst_43 {dimension_numbers = #tpu.dot_dimension_numbers<[1], [0], [0], [1], [0, 0, 1, 1], [], []>} : vector<2x16xf32>, vector<16x16xf32>, vector<2x16xf32> -> vector<2x16xf32>
    %cst_44 = arith.constant dense<0.000000e+00> : vector<16xf32>
    %116 = vector.multi_reduction <add>, %3, %cst_44 [0] : vector<8x16xf32> to vector<16xf32>
    %117 = vector.shape_cast %116 : vector<16xf32> to vector<1x16xf32>
    %cst_45 = arith.constant 8.000000e+00 : f32
    %118 = vector.broadcast %cst_45 : f32 to vector<1x16xf32>
    %119 = arith.divf %117, %118 : vector<1x16xf32>
    %120 = vector.extract_strided_slice %115 {offsets = [0, 0], sizes = [1, 16], strides = [1, 1]} : vector<2x16xf32> to vector<1x16xf32>
    %c0_46 = arith.constant 0 : index
    %c0_47 = arith.constant 0 : index
    %121 = vector.load %arg15[%c0_46, %c0_47] : memref<1x48xf32, #tpu.memory_space<vmem>>, vector<1x16xf32>
    tpu.vector_store %arg15[%c0_46, %c0_47], %120 {strides = array<i32>} : memref<1x48xf32, #tpu.memory_space<vmem>>, vector<1x16xf32>,
    %c0_48 = arith.constant 0 : index
    %c16 = arith.constant 16 : index
    %122 = vector.load %arg15[%c0_48, %c16] : memref<1x48xf32, #tpu.memory_space<vmem>>, vector<1x16xf32>
    tpu.vector_store %arg15[%c0_48, %c16], %119 {strides = array<i32>} : memref<1x48xf32, #tpu.memory_space<vmem>>, vector<1x16xf32>,
    %123 = vector.extract_strided_slice %115 {offsets = [1, 0], sizes = [1, 16], strides = [1, 1]} : vector<2x16xf32> to vector<1x16xf32>
    %c0_49 = arith.constant 0 : index
    %c32 = arith.constant 32 : index
    %124 = vector.load %arg15[%c0_49, %c32] : memref<1x48xf32, #tpu.memory_space<vmem>>, vector<1x16xf32>
    tpu.vector_store %arg15[%c0_49, %c32], %123 {strides = array<i32>} : memref<1x48xf32, #tpu.memory_space<vmem>>, vector<1x16xf32>,
    %c0_50 = arith.constant 0 : index
    %c0_51 = arith.constant 0 : index
    %125 = vector.load %arg15[%c0_50, %c0_51] : memref<1x48xf32, #tpu.memory_space<vmem>>, vector<1x48xf32>
    %c0_52 = arith.constant 0 : index
    %c0_53 = arith.constant 0 : index
    %126 = vector.load %arg5[%c0_52, %c0_53] : memref<48x96xf32, #tpu.memory_space<vmem>>, vector<48x96xf32>
    %cst_54 = arith.constant dense<0.000000e+00> : vector<1x96xf32>
    %127 = tpu.matmul %125, %126, %cst_54 {dimension_numbers = #tpu.dot_dimension_numbers<[1], [0], [0], [1], [0, 0, 1, 1], [], []>} : vector<1x48xf32>, vector<48x96xf32>, vector<1x96xf32> -> vector<1x96xf32>
    %c0_55 = arith.constant 0 : index
    %c0_56 = arith.constant 0 : index
    %128 = vector.load %arg6[%c0_55, %c0_56] : memref<1x96xf32, #tpu.memory_space<vmem>>, vector<1x96xf32>
    %129 = arith.addf %127, %128 : vector<1x96xf32>
    %130 = tpu.iota {dimensions = array<i32: 1>} : vector<1x96xi32>
    %c64_i32 = arith.constant 64 : i32
    %131 = vector.broadcast %c64_i32 : i32 to vector<1x96xi32>
    %132 = arith.cmpi slt, %130, %131 : vector<1x96xi32>
    %cst_57 = arith.constant 0.000000e+00 : f32
    %133 = vector.broadcast %cst_57 : f32 to vector<1x96xf32>
    %134 = arith.maximumf %129, %133 : vector<1x96xf32>
    %135 = vector.broadcast %cst_57 : f32 to vector<1x96xf32>
    %136 = arith.subf %129, %135 : vector<1x96xf32>
    %137 = arith.cmpf one, %136, %136 : vector<1x96xf32>
    %138 = vector.broadcast %cst_57 : f32 to vector<1x96xf32>
    %139 = arith.addf %129, %138 : vector<1x96xf32>
    %140 = math.absf %136 : vector<1x96xf32>
    %cst_58 = arith.constant 0.000000e+00 : f32
    %141 = vector.broadcast %cst_58 : f32 to vector<1x96xf32>
    %142 = arith.subf %141, %140 : vector<1x96xf32>
    %143 = math.exp %142 : vector<1x96xf32>
    %144 = math.log1p %143 : vector<1x96xf32>
    %145 = arith.addf %134, %144 : vector<1x96xf32>
    %146 = arith.select %137, %139, %145 : vector<1x96xi1>, vector<1x96xf32>
    %cst_59 = arith.constant 0.693147182 : f32
    %147 = vector.broadcast %cst_59 : f32 to vector<1x96xf32>
    %148 = arith.subf %146, %147 : vector<1x96xf32>
    %149 = arith.select %132, %148, %129 : vector<1x96xi1>, vector<1x96xf32>
    %c0_60 = arith.constant 0 : index
    %c0_61 = arith.constant 0 : index
    %150 = vector.load %arg7[%c0_60, %c0_61] : memref<96x65xf32, #tpu.memory_space<vmem>>, vector<96x65xf32>
    %cst_62 = arith.constant dense<0.000000e+00> : vector<1x65xf32>
    %151 = tpu.matmul %149, %150, %cst_62 {dimension_numbers = #tpu.dot_dimension_numbers<[1], [0], [0], [1], [0, 0, 1, 1], [], []>} : vector<1x96xf32>, vector<96x65xf32>, vector<1x65xf32> -> vector<1x65xf32>
    %c0_63 = arith.constant 0 : index
    %c0_64 = arith.constant 0 : index
    %152 = vector.load %arg8[%c0_63, %c0_64] : memref<1x65xf32, #tpu.memory_space<vmem>>, vector<1x65xf32>
    %153 = arith.addf %151, %152 : vector<1x65xf32>
    %154 = vector.extract_strided_slice %153 {offsets = [0, 0], sizes = [1, 32], strides = [1, 1]} : vector<1x65xf32> to vector<1x32xf32>
    %155 = vector.extract_strided_slice %153 {offsets = [0, 32], sizes = [1, 32], strides = [1, 1]} : vector<1x65xf32> to vector<1x32xf32>
    %156 = vector.extract_strided_slice %153 {offsets = [0, 64], sizes = [1, 1], strides = [1, 1]} : vector<1x65xf32> to vector<1x1xf32>
    %c0_65 = arith.constant 0 : index
    %c0_66 = arith.constant 0 : index
    %157 = vector.load %arg9[%c0_65, %c0_66] : memref<32x32xf32, #tpu.memory_space<vmem>>, vector<32x32xf32>
    %cst_67 = arith.constant dense<0.000000e+00> : vector<1x32xf32>
    %158 = tpu.matmul %154, %157, %cst_67 {dimension_numbers = #tpu.dot_dimension_numbers<[1], [0], [0], [1], [0, 0, 1, 1], [], []>} : vector<1x32xf32>, vector<32x32xf32>, vector<1x32xf32> -> vector<1x32xf32>
    %159 = arith.addf %158, %155 : vector<1x32xf32>
    %c0_68 = arith.constant 0 : index
    %c0_69 = arith.constant 0 : index
    %160 = vector.load %arg10[%c0_68, %c0_69] : memref<1x32xf32, #tpu.memory_space<vmem>>, vector<1x32xf32>
    %161 = arith.addf %159, %160 : vector<1x32xf32>
    %cst_70 = arith.constant 0.000000e+00 : f32
    %162 = vector.broadcast %cst_70 : f32 to vector<1x32xf32>
    %163 = arith.maximumf %161, %162 : vector<1x32xf32>
    %164 = vector.broadcast %cst_70 : f32 to vector<1x32xf32>
    %165 = arith.subf %161, %164 : vector<1x32xf32>
    %166 = arith.cmpf one, %165, %165 : vector<1x32xf32>
    %167 = vector.broadcast %cst_70 : f32 to vector<1x32xf32>
    %168 = arith.addf %161, %167 : vector<1x32xf32>
    %169 = math.absf %165 : vector<1x32xf32>
    %cst_71 = arith.constant 0.000000e+00 : f32
    %170 = vector.broadcast %cst_71 : f32 to vector<1x32xf32>
    %171 = arith.subf %170, %169 : vector<1x32xf32>
    %172 = math.exp %171 : vector<1x32xf32>
    %173 = math.log1p %172 : vector<1x32xf32>
    %174 = arith.addf %163, %173 : vector<1x32xf32>
    %175 = arith.select %166, %168, %174 : vector<1x32xi1>, vector<1x32xf32>
    %cst_72 = arith.constant 0.693147182 : f32
    %176 = vector.broadcast %cst_72 : f32 to vector<1x32xf32>
    %177 = arith.subf %175, %176 : vector<1x32xf32>
    %c0_73 = arith.constant 0 : index
    %c0_74 = arith.constant 0 : index
    %178 = vector.load %arg11[%c0_73, %c0_74] : memref<32x8xf32, #tpu.memory_space<vmem>>, vector<32x8xf32>
    %cst_75 = arith.constant dense<0.000000e+00> : vector<1x8xf32>
    %179 = tpu.matmul %177, %178, %cst_75 {dimension_numbers = #tpu.dot_dimension_numbers<[1], [0], [0], [1], [0, 0, 1, 1], [], []>} : vector<1x32xf32>, vector<32x8xf32>, vector<1x8xf32> -> vector<1x8xf32>
    %c0_76 = arith.constant 0 : index
    %c0_77 = arith.constant 0 : index
    %180 = vector.load %arg12[%c0_76, %c0_77] : memref<1x8xf32, #tpu.memory_space<vmem>>, vector<1x8xf32>
    %181 = arith.addf %179, %180 : vector<1x8xf32>
    %cst_78 = arith.constant dense<0xFF800000> : vector<1xf32>
    %182 = vector.multi_reduction <maximumf>, %181, %cst_78 [1] : vector<1x8xf32> to vector<1xf32>
    %183 = vector.shape_cast %182 : vector<1xf32> to vector<1x1xf32>
    %184 = vector.broadcast %183 : vector<1x1xf32> to vector<1x8xf32>
    %185 = arith.subf %181, %184 : vector<1x8xf32>
    %186 = math.exp %185 : vector<1x8xf32>
    %cst_79 = arith.constant dense<0.000000e+00> : vector<1xf32>
    %187 = vector.multi_reduction <add>, %186, %cst_79 [1] : vector<1x8xf32> to vector<1xf32>
    %188 = vector.shape_cast %187 : vector<1xf32> to vector<1x1xf32>
    %189 = tpu.reciprocal %188 {approx = true} : vector<1x1xf32> -> vector<1x1xf32>
    %190 = vector.broadcast %189 : vector<1x1xf32> to vector<1x8xf32>
    %191 = arith.mulf %186, %190 : vector<1x8xf32>
    %192 = arith.negf %156 : vector<1x1xf32>
    %193 = math.exp %192 : vector<1x1xf32>
    %cst_80 = arith.constant 1.000000e+00 : f32
    %194 = vector.broadcast %cst_80 : f32 to vector<1x1xf32>
    %195 = arith.addf %194, %193 : vector<1x1xf32>
    %196 = arith.divf %194, %195 : vector<1x1xf32>
    %cst_81 = arith.constant 0.000000e+00 : f32
    %197 = vector.broadcast %cst_81 : f32 to vector<1x128xf32>
    %c0_82 = arith.constant 0 : index
    %c0_83 = arith.constant 0 : index
    %198 = vector.load %arg13[%c0_82, %c0_83] : memref<1x128xf32, #tpu.memory_space<vmem>>, vector<1x128xf32>
    tpu.vector_store %arg13[%c0_82, %c0_83], %197 {strides = array<i32>} : memref<1x128xf32, #tpu.memory_space<vmem>>, vector<1x128xf32>,
    %c0_84 = arith.constant 0 : index
    %c0_85 = arith.constant 0 : index
    %199 = vector.load %arg13[%c0_84, %c0_85] : memref<1x128xf32, #tpu.memory_space<vmem>>, vector<1x8xf32>
    tpu.vector_store %arg13[%c0_84, %c0_85], %191 {strides = array<i32>} : memref<1x128xf32, #tpu.memory_space<vmem>>, vector<1x8xf32>,
    %c0_86 = arith.constant 0 : index
    %c8 = arith.constant 8 : index
    %200 = vector.load %arg13[%c0_86, %c8] : memref<1x128xf32, #tpu.memory_space<vmem>>, vector<1x1xf32>
    tpu.vector_store %arg13[%c0_86, %c8], %196 {strides = array<i32>} : memref<1x128xf32, #tpu.memory_space<vmem>>, vector<1x1xf32>,
    return
  }
}

</mosaic_0001>

<llo_original>
// kernel: tpu_custom_call.1
$region0: #{tpu_custom_call.1}
  #allocation0 [shape = 'u32[]', space=smem, size = 0x4, offset = 0x4, fixed_abs, tag = 'smem constant byte address 0x4 - core index']
  #allocation1 [shape = 'u32[72,128]{1,0:T(1,128)}', space=vmem, size = 0x9000, scoped, tag = 'internal scratch']
  #allocation2 [shape = 'f32[2,16]{1,0:T(2,128)}', space=vmem, size = 0x400, scoped, tag = 'scratch operand']
  #allocation3 [shape = 'f32[1,48]{1,0:T(1,128)}', space=vmem, size = 0x200, scoped, tag = 'scratch operand']
  %s0 = inlined_call_operand.vmem [shape: f32[3,1], index: 0, kind: input, shape index: {}]
  %s1 = inlined_call_operand.vmem [shape: f32[3,16], index: 1, kind: input, shape index: {}]
  %s2 = inlined_call_operand.vmem [shape: f32[16,16], index: 2, kind: input, shape index: {}]
  %s3 = inlined_call_operand.vmem [shape: f32[3,8], index: 3, kind: input, shape index: {}]
  %s4 = inlined_call_operand.vmem [shape: f32[8,16], index: 4, kind: input, shape index: {}]
  %s5 = inlined_call_operand.vmem [shape: f32[48,96], index: 5, kind: input, shape index: {}]
  %s6 = inlined_call_operand.vmem [shape: f32[1,96], index: 6, kind: input, shape index: {}]
  %s7 = inlined_call_operand.vmem [shape: f32[96,65], index: 7, kind: input, shape index: {}]
  %s8 = inlined_call_operand.vmem [shape: f32[1,65], index: 8, kind: input, shape index: {}]
  %s9 = inlined_call_operand.vmem [shape: f32[32,32], index: 9, kind: input, shape index: {}]
  %s10 = inlined_call_operand.vmem [shape: f32[1,32], index: 10, kind: input, shape index: {}]
  %s11 = inlined_call_operand.vmem [shape: f32[32,8], index: 11, kind: input, shape index: {}]
  %s12 = inlined_call_operand.vmem [shape: f32[1,8], index: 12, kind: input, shape index: {}]
  %s13 = inlined_call_operand.hbm [shape: f32[1,128], index: 13, kind: output, shape index: {}]
  %s14 = sld [smem:[#allocation0]]
  $region62: #{tpu_custom_call.1} parent=0
    _
  %s16 = ssub.s32 1, %s14
  %s17 = scalar_select 0, %s16, %s14
  $region1: #{tpu_custom_call.1} parent=0
    #allocation4 [shape = 'u8[512]{0}', space=vmem, size = 0x400, scoped, tag = 'output window, operand 0, single buffered']
    #allocation5 [shape = 's32[1]{0}', space=sflag, size = 0x4, scoped, tag = 'scoped memory for tpu_custom_call.1']
    %18 = vsyncpa [#allocation5], 0
    // Predicated region
    $region2: #{tpu_custom_call.1} parent=1 // pred_check
      _
    $region3: #{tpu_custom_call.1} parent=1 // pred_check_branch
      %20 = sbr.rel (0) target = $region5
    $region4: #{tpu_custom_call.1} parent=1 // pred_region
      _
    $region5: #{tpu_custom_call.1} parent=1 // pred_fallthru
      _
    // Predicated region
    $region6: #{tpu_custom_call.1} parent=1 // pred_check
      _
    $region7: #{tpu_custom_call.1} parent=1 // pred_check_branch
      %22 = sbr.rel (0) target = $region9
    $region8: #{tpu_custom_call.1} parent=1 // pred_region
      _
    $region9: #{tpu_custom_call.1} parent=1 // pred_fallthru
      _
    // Predicated region
    $region10: #{tpu_custom_call.1} parent=1 // pred_check
      _
    $region11: #{tpu_custom_call.1} parent=1 // pred_check_branch
      %24 = sbr.rel (0) target = $region13
    $region12: #{tpu_custom_call.1} parent=1 // pred_region
      _
    $region13: #{tpu_custom_call.1} parent=1 // pred_fallthru
      _
    // Predicated region
    $region14: #{tpu_custom_call.1} parent=1 // pred_check
      _
    $region15: #{tpu_custom_call.1} parent=1 // pred_check_branch
      %26 = sbr.rel (0) target = $region17
    $region16: #{tpu_custom_call.1} parent=1 // pred_region
      _
    $region17: #{tpu_custom_call.1} parent=1 // pred_fallthru
      _
    // Predicated region
    $region18: #{tpu_custom_call.1} parent=1 // pred_check
      _
    $region19: #{tpu_custom_call.1} parent=1 // pred_check_branch
      %28 = sbr.rel (0) target = $region21
    $region20: #{tpu_custom_call.1} parent=1 // pred_region
      _
    $region21: #{tpu_custom_call.1} parent=1 // pred_fallthru
      _
    // Predicated region
    $region22: #{tpu_custom_call.1} parent=1 // pred_check
      _
    $region23: #{tpu_custom_call.1} parent=1 // pred_check_branch
      %30 = sbr.rel (0) target = $region25
    $region24: #{tpu_custom_call.1} parent=1 // pred_region
      _
    $region25: #{tpu_custom_call.1} parent=1 // pred_fallthru
      _
    // Predicated region
    $region26: #{tpu_custom_call.1} parent=1 // pred_check
      _
    $region27: #{tpu_custom_call.1} parent=1 // pred_check_branch
      %32 = sbr.rel (0) target = $region29
    $region28: #{tpu_custom_call.1} parent=1 // pred_region
      _
    $region29: #{tpu_custom_call.1} parent=1 // pred_fallthru
      _
    // Predicated region
    $region30: #{tpu_custom_call.1} parent=1 // pred_check
      _
    $region31: #{tpu_custom_call.1} parent=1 // pred_check_branch
      %34 = sbr.rel (0) target = $region33
    $region32: #{tpu_custom_call.1} parent=1 // pred_region
      _
    $region33: #{tpu_custom_call.1} parent=1 // pred_fallthru
      _
    // Predicated region
    $region34: #{tpu_custom_call.1} parent=1 // pred_check
      _
    $region35: #{tpu_custom_call.1} parent=1 // pred_check_branch
      %36 = sbr.rel (0) target = $region37
    $region36: #{tpu_custom_call.1} parent=1 // pred_region
      _
    $region37: #{tpu_custom_call.1} parent=1 // pred_fallthru
      _
    // Predicated region
    $region38: #{tpu_custom_call.1} parent=1 // pred_check
      _
    $region39: #{tpu_custom_call.1} parent=1 // pred_check_branch
      %38 = sbr.rel (0) target = $region41
    $region40: #{tpu_custom_call.1} parent=1 // pred_region
      _
    $region41: #{tpu_custom_call.1} parent=1 // pred_fallthru
      _
    // Predicated region
    $region42: #{tpu_custom_call.1} parent=1 // pred_check
      _
    $region43: #{tpu_custom_call.1} parent=1 // pred_check_branch
      %40 = sbr.rel (0) target = $region45
    $region44: #{tpu_custom_call.1} parent=1 // pred_region
      _
    $region45: #{tpu_custom_call.1} parent=1 // pred_fallthru
      _
    // Predicated region
    $region46: #{tpu_custom_call.1} parent=1 // pred_check
      _
    $region47: #{tpu_custom_call.1} parent=1 // pred_check_branch
      %42 = sbr.rel (0) target = $region49
    $region48: #{tpu_custom_call.1} parent=1 // pred_region
      _
    $region49: #{tpu_custom_call.1} parent=1 // pred_fallthru
      _
    // Predicated region
    $region50: #{tpu_custom_call.1} parent=1 // pred_check
      _
    $region51: #{tpu_custom_call.1} parent=1 // pred_check_branch
      %44 = sbr.rel (0) target = $region53
    $region52: #{tpu_custom_call.1} parent=1 // pred_region
      _
    $region53: #{tpu_custom_call.1} parent=1 // pred_fallthru
      _
    %v45 = vld [vmem:[%s1] sm:$0x7]
    %v46 = vld [vmem:[%s2] sm:$0xff]
    %v47 = vld [vmem:[%s2 + $0x8] sm:$0xff]
    %v48 = vld [vmem:[%s3] sm:$0x7]
    %v49 = vld [vmem:[%s4] sm:$0xff]
    %v50 = vld [vmem:[%s0] sm:$0x7]
    %vm51 = vcmask 59392
    %v52 = vsel %vm51, %v48, 0.0
    %53 = vadd.xlane.f32.xlu0 %v52
    %v54 = vpop.xlane.xlu0 %53
    %v55 = vrcp.pop 8.0
    %v56 = vmul.f32 8.0, %v55
    %v57 = vsub.f32 1.0, %v56
    %v58 = vmul.f32 %v55, %v57
    %v59 = vadd.f32 %v55, %v58
    %vm60 = vweird.f32 %v55
    %v61 = vsel %vm60, %v55, %v59
    %v62 = vmul.f32 %v54, %v61
    %v63 = vsub.f32 %v45, %v62
    %v64 = vmul.f32 %v63, %v63
    %vm65 = vcmask 124928
    %v66 = vsel %vm65, %v64, 0.0
    %v67 = vrot.slane %v66, 4
    %v68 = vadd.f32 %v66, %v67
    %v69 = vrot.slane %v68, 2
    %v70 = vadd.f32 %v68, %v69
    %v71 = vrot.slane %v70, 1
    %v72 = vadd.f32 %v70, %v71
    %74 = vset.pattern.permute.xlu0 0
    %75 = vperm.xlu0 %74, %v50
    %v76 = vpop.permute.xlu0 %75
    %v78 = vsub.f32 %v45, %v76
    %v79 = vmul.f32 %v78, %v78
    %v80 = vsel %vm65, %v79, 0.0
    %v81 = vrot.slane %v80, 4
    %v82 = vadd.f32 %v80, %v81
    %v83 = vrot.slane %v82, 2
    %v84 = vadd.f32 %v82, %v83
    %v85 = vrot.slane %v84, 1
    %v86 = vadd.f32 %v84, %v85
    %v87 = vadd.f32 %v86, 1.0
    %v88 = vrcp.pop %v87
    %vm89 = vcmask 130048
    %v90 = vsel %vm89, %v88, 0.0
    %91 = vadd.xlane.f32.xlu0 %v90
    %v92 = vpop.xlane.xlu0 %91
    %v93 = vrcp.pop %v92
    %v94 = vmul.f32 %v88, %v93
    %v95 = vlaneseq
    %v96 = vand.u32 %v95, 127
    %v97 = vsel %vm89, %v72, inf
    %98 = vmin.xlane.f32.xlu0 %v97
    %v99 = vpop.xlane.xlu0 %98
    %vm100 = vcmp.le.f32.partialorder %v72, %v99
    %v101 = vsel %vm100, %v96, 16
    %v102 = vsel %vm89, %v101, 2147483647
    %v103 = vand.u32 %v102, 65535
    %v104 = vshra.s32 %v102, 16
    %v105 = vcvt.s32.f32 %v103
    %v106 = vcvt.s32.f32 %v104
    %107 = vmin.xlane.f32.xlu0 %v106
    %v108 = vpop.xlane.xlu0 %107
    %vm109 = vcmp.eq.f32.partialorder %v106, %v108
    %v110 = vsel %vm109, %v105, inf
    %111 = vmin.xlane.f32.xlu0 %v110
    %v112 = vpop.xlane.xlu0 %111
    %v113 = vcvt.f32.s32 %v112
    %v114 = vcvt.f32.s32 %v108
    %v115 = vshll.u32 %v114, 16
    %v116 = vadd.s32 %v115, %v113
    %vm117 = vcmp.eq.s32.totalorder %v96, %v116
    %v118 = vsel %vm117, 1, 0
    %v119 = vcvt.s32.f32 %v118
    %v120 = vadd.f32 %v119, 0.0
    %vm121 = vcmp.gt.f32.partialorder %v119, 0.0
    %v122 = vsel %vm121, inf, %v72
    %v123 = vsel %vm89, %v122, inf
    %124 = vmin.xlane.f32.xlu0 %v123
    %v125 = vpop.xlane.xlu0 %124
    %vm126 = vcmp.le.f32.partialorder %v122, %v125
    %v127 = vsel %vm126, %v96, 16
    %v128 = vsel %vm89, %v127, 2147483647
    %v129 = vand.u32 %v128, 65535
    %v130 = vshra.s32 %v128, 16
    %v131 = vcvt.s32.f32 %v129
    %v132 = vcvt.s32.f32 %v130
    %133 = vmin.xlane.f32.xlu0 %v132
    %v134 = vpop.xlane.xlu0 %133
    %vm135 = vcmp.eq.f32.partialorder %v132, %v134
    %v136 = vsel %vm135, %v131, inf
    %137 = vmin.xlane.f32.xlu0 %v136
    %v138 = vpop.xlane.xlu0 %137
    %v139 = vcvt.f32.s32 %v138
    %v140 = vcvt.f32.s32 %v134
    %v141 = vshll.u32 %v140, 16
    %v142 = vadd.s32 %v141, %v139
    %vm143 = vcmp.eq.s32.totalorder %v96, %v142
    %v144 = vsel %vm143, 1, 0
    %v145 = vcvt.s32.f32 %v144
    %v146 = vadd.f32 %v120, %v145
    %vm147 = vcmp.gt.f32.partialorder %v145, 0.0
    %v148 = vsel %vm147, inf, %v122
    %v149 = vsel %vm89, %v148, inf
    %150 = vmin.xlane.f32.xlu0 %v149
    %v151 = vpop.xlane.xlu0 %150
    %vm152 = vcmp.le.f32.partialorder %v148, %v151
    %v153 = vsel %vm152, %v96, 16
    %v154 = vsel %vm89, %v153, 2147483647
    %v155 = vand.u32 %v154, 65535
    %v156 = vshra.s32 %v154, 16
    %v157 = vcvt.s32.f32 %v155
    %v158 = vcvt.s32.f32 %v156
    %159 = vmin.xlane.f32.xlu0 %v158
    %v160 = vpop.xlane.xlu0 %159
    %vm161 = vcmp.eq.f32.partialorder %v158, %v160
    %v162 = vsel %vm161, %v157, inf
    %163 = vmin.xlane.f32.xlu0 %v162
    %v164 = vpop.xlane.xlu0 %163
    %v165 = vcvt.f32.s32 %v164
    %v166 = vcvt.f32.s32 %v160
    %v167 = vshll.u32 %v166, 16
    %v168 = vadd.s32 %v167, %v165
    %vm169 = vcmp.eq.s32.totalorder %v96, %v168
    %v170 = vsel %vm169, 1, 0
    %v171 = vcvt.s32.f32 %v170
    %v172 = vadd.f32 %v146, %v171
    %vm173 = vcmp.gt.f32.partialorder %v171, 0.0
    %v174 = vsel %vm173, inf, %v148
    %v175 = vsel %vm89, %v174, inf
    %176 = vmin.xlane.f32.xlu0 %v175
    %v177 = vpop.xlane.xlu0 %176
    %vm178 = vcmp.le.f32.partialorder %v174, %v177
    %v179 = vsel %vm178, %v96, 16
    %v180 = vsel %vm89, %v179, 2147483647
    %v181 = vand.u32 %v180, 65535
    %v182 = vshra.s32 %v180, 16
    %v183 = vcvt.s32.f32 %v181
    %v184 = vcvt.s32.f32 %v182
    %185 = vmin.xlane.f32.xlu0 %v184
    %v186 = vpop.xlane.xlu0 %185
    %vm187 = vcmp.eq.f32.partialorder %v184, %v186
    %v188 = vsel %vm187, %v183, inf
    %189 = vmin.xlane.f32.xlu0 %v188
    %v190 = vpop.xlane.xlu0 %189
    %v191 = vcvt.f32.s32 %v190
    %v192 = vcvt.f32.s32 %v186
    %v193 = vshll.u32 %v192, 16
    %v194 = vadd.s32 %v193, %v191
    %vm195 = vcmp.eq.s32.totalorder %v96, %v194
    %v196 = vsel %vm195, 1, 0
    %v197 = vcvt.s32.f32 %v196
    %v198 = vadd.f32 %v172, %v197
    %vm199 = vcmp.gt.f32.partialorder %v197, 0.0
    %v200 = vsel %vm199, inf, %v174
    %v201 = vsel %vm89, %v200, inf
    %202 = vmin.xlane.f32.xlu0 %v201
    %v203 = vpop.xlane.xlu0 %202
    %vm204 = vcmp.le.f32.partialorder %v200, %v203
    %v205 = vsel %vm204, %v96, 16
    %v206 = vsel %vm89, %v205, 2147483647
    %v207 = vand.u32 %v206, 65535
    %v208 = vshra.s32 %v206, 16
    %v209 = vcvt.s32.f32 %v207
    %v210 = vcvt.s32.f32 %v208
    %211 = vmin.xlane.f32.xlu0 %v210
    %v212 = vpop.xlane.xlu0 %211
    %vm213 = vcmp.eq.f32.partialorder %v210, %v212
    %v214 = vsel %vm213, %v209, inf
    %215 = vmin.xlane.f32.xlu0 %v214
    %v216 = vpop.xlane.xlu0 %215
    %v217 = vcvt.f32.s32 %v216
    %v218 = vcvt.f32.s32 %v212
    %v219 = vshll.u32 %v218, 16
    %v220 = vadd.s32 %v219, %v217
    %vm221 = vcmp.eq.s32.totalorder %v96, %v220
    %v222 = vsel %vm221, 1, 0
    %v223 = vcvt.s32.f32 %v222
    %v224 = vadd.f32 %v198, %v223
    %v225 = vmul.f32 %v224, 0.2
    %vm226 = vcmask 122880
    %227 = vst.msk [vmem:[#allocation2] sm:$0x1] %vm226, %v225
    %228 = vst.msk [vmem:[#allocation2 + $0x1] sm:$0x1] %vm226, %v94
    %v229 = vld [vmem:[#allocation2] sm:$0x3]
    %v231 = vsel %vm89, %v229, 0
    %233 = vmatpush.msra.mxu0 0.0
    %234 = vmatpush.msra.mxu0 0.0
    %235 = vmatpush.msra.mxu0 0.0
    %236 = vmatpush.msra.mxu0 0.0
    %237 = vmatpush.msra.mxu0 0.0
    %238 = vmatpush.msra.mxu0 0.0
    %239 = vmatpush.msra.mxu0 0.0
    %240 = vmatpush.msra.mxu0 0.0
    %241 = vmatpush.msra.mxu0 0.0
    %242 = vmatpush.msra.mxu0 0.0
    %243 = vmatpush.msra.mxu0 0.0
    %244 = vmatpush.msra.mxu0 0.0
    %245 = vmatpush.msra.mxu0 0.0
    %246 = vmatpush.msra.mxu0 0.0
    %247 = vmatpush.msra.mxu0 %v47
    %248 = vmatpush.msra.mxu0 %v46
    %249 = vmatmul.f32.gmra.mxu0 %v231
    %v250 = vpop.f32.mrf.mxu0
    %v251 = vadd.f32 0.0, %v250
    %252 = vdwg.mxu0
    %v253 = vsel %vm89, %v49, 0.0
    %v254 = vrot.slane %v253, 4
    %v255 = vadd.f32 %v253, %v254
    %v256 = vrot.slane %v255, 2
    %v257 = vadd.f32 %v255, %v256
    %v258 = vrot.slane %v257, 1
    %v259 = vadd.f32 %v257, %v258
    %v260 = vmul.f32 %v259, %v61
    %261 = vst.msk [vmem:[#allocation3] sm:$0x1] %vm226, %v251
    %263 = vrot.lane.b32.xlu0 %v260, 16
    %v264 = vpop.permute.xlu0 %263
    %vm266 = vcmask 254080
    %267 = vst.msk [vmem:[#allocation3] sm:$0x1] %vm266, %v264
    %269 = vrot.lane.b32.xlu0 %v251, 32
    %v270 = vpop.permute.xlu0 %269
    %vm272 = vcmask 386305
    %273 = vst.msk [vmem:[#allocation3 - $0x1] sm:$0x2] %vm272, %v270
    %v274 = vld [vmem:[#allocation3] sm:$0x1]
    %v275 = vld [vmem:[%s5] sm:$0xff]
    %v276 = vld [vmem:[%s5 + $0x8] sm:$0xff]
    %v277 = vld [vmem:[%s5 + $0x10] sm:$0xff]
    %v278 = vld [vmem:[%s5 + $0x18] sm:$0xff]
    %v279 = vld [vmem:[%s5 + $0x20] sm:$0xff]
    %v280 = vld [vmem:[%s5 + $0x28] sm:$0xff]
    %v281 = vld [vmem:[%s6] sm:$0x1]
    %vm282 = vcmask 392192
    %v284 = vsel %vm282, %v274, 0
    %286 = vmatpush.msra.mxu0 0.0
    %287 = vmatpush.msra.mxu0 0.0
    %288 = vmatpush.msra.mxu0 0.0
    %289 = vmatpush.msra.mxu0 0.0
    %290 = vmatpush.msra.mxu0 0.0
    %291 = vmatpush.msra.mxu0 0.0
    %292 = vmatpush.msra.mxu0 0.0
    %293 = vmatpush.msra.mxu0 0.0
    %294 = vmatpush.msra.mxu0 0.0
    %295 = vmatpush.msra.mxu0 0.0
    %296 = vmatpush.msra.mxu0 %v280
    %297 = vmatpush.msra.mxu0 %v279
    %298 = vmatpush.msra.mxu0 %v278
    %299 = vmatpush.msra.mxu0 %v277
    %300 = vmatpush.msra.mxu0 %v276
    %301 = vmatpush.msra.mxu0 %v275
    %302 = vmatmul.f32.gmra.mxu0 %v284
    %v303 = vpop.f32.mrf.mxu0
    %v304 = vadd.f32 %v281, %v303
    %305 = vdwg.mxu0
    %vm306 = vcmp.lt.s32.totalorder %v96, 64
    %v307 = vmax.f32 %v304, 0.0
    %vm308 = vcmp.ne.f32.partialorder %v304, %v304
    %v309 = vadd.f32 %v304, 0.0
    %v310 = vand.u32 2147483647, %v304
    %v311 = vsub.f32 0.0, %v310
    %v312 = vmul.f32 %v311, 1.442695
    %v313 = vpow.pop %v312
    %v314 = vadd.f32 %v313, 1.0
    %v315 = vlog2.pop %v314
    %v316 = vmul.f32 %v315, 0.6931472
    %v317 = vmul.f32 -0.5, %v313
    %v318 = vadd.f32 %v317, 1.0
    %v319 = vmul.f32 %v318, %v313
    %v320 = vand.u32 2147483647, %v313
    %vm321 = vcmp.lt.f32.partialorder %v320, 0.0004427343
    %v322 = vsel %vm321, %v319, %v316
    %v323 = vadd.f32 %v307, %v322
    %v324 = vsel %vm308, %v309, %v323
    %v325 = vsub.f32 %v324, 0.6931472
    %v326 = vsel %vm306, %v325, %v304
    %v327 = vld [vmem:[%s7] sm:$0xff]
    %v328 = vld [vmem:[%s7 + $0x8] sm:$0xff]
    %v329 = vld [vmem:[%s7 + $0x10] sm:$0xff]
    %v330 = vld [vmem:[%s7 + $0x18] sm:$0xff]
    %v331 = vld [vmem:[%s7 + $0x20] sm:$0xff]
    %v332 = vld [vmem:[%s7 + $0x28] sm:$0xff]
    %v333 = vld [vmem:[%s7 + $0x30] sm:$0xff]
    %v334 = vld [vmem:[%s7 + $0x38] sm:$0xff]
    %v335 = vld [vmem:[%s7 + $0x40] sm:$0xff]
    %v336 = vld [vmem:[%s7 + $0x48] sm:$0xff]
    %v337 = vld [vmem:[%s7 + $0x50] sm:$0xff]
    %v338 = vld [vmem:[%s7 + $0x58] sm:$0xff]
    %v339 = vld [vmem:[%s8] sm:$0x1]
    %vm340 = vcmask 785408
    %v342 = vsel %vm340, %v326, 0
    %344 = vmatpush.msra.mxu0 0.0
    %345 = vmatpush.msra.mxu0 0.0
    %346 = vmatpush.msra.mxu0 0.0
    %347 = vmatpush.msra.mxu0 0.0
    %348 = vmatpush.msra.mxu0 %v338
    %349 = vmatpush.msra.mxu0 %v337
    %350 = vmatpush.msra.mxu0 %v336
    %351 = vmatpush.msra.mxu0 %v335
    %352 = vmatpush.msra.mxu0 %v334
    %353 = vmatpush.msra.mxu0 %v333
    %354 = vmatpush.msra.mxu0 %v332
    %355 = vmatpush.msra.mxu0 %v331
    %356 = vmatpush.msra.mxu0 %v330
    %357 = vmatpush.msra.mxu0 %v329
    %358 = vmatpush.msra.mxu0 %v328
    %359 = vmatpush.msra.mxu0 %v327
    %360 = vmatmul.f32.gmra.mxu0 %v342
    %v361 = vpop.f32.mrf.mxu0
    %v362 = vadd.f32 %v339, %v361
    %363 = vdwg.mxu0
    %v364 = vld [vmem:[%s9] sm:$0xff]
    %v365 = vld [vmem:[%s9 + $0x8] sm:$0xff]
    %v366 = vld [vmem:[%s9 + $0x10] sm:$0xff]
    %v367 = vld [vmem:[%s9 + $0x18] sm:$0xff]
    %369 = vrot.lane.b32.xlu0 %v362, 96
    %v370 = vpop.permute.xlu0 %369
    %vm372 = vcmask 261120
    %v373 = vsel %vm372, %v362, 0
    %375 = vmatpush.msra.mxu0 0.0
    %376 = vmatpush.msra.mxu0 0.0
    %377 = vmatpush.msra.mxu0 0.0
    %378 = vmatpush.msra.mxu0 0.0
    %379 = vmatpush.msra.mxu0 0.0
    %380 = vmatpush.msra.mxu0 0.0
    %381 = vmatpush.msra.mxu0 0.0
    %382 = vmatpush.msra.mxu0 0.0
    %383 = vmatpush.msra.mxu0 0.0
    %384 = vmatpush.msra.mxu0 0.0
    %385 = vmatpush.msra.mxu0 0.0
    %386 = vmatpush.msra.mxu0 0.0
    %387 = vmatpush.msra.mxu0 %v367
    %388 = vmatpush.msra.mxu0 %v366
    %389 = vmatpush.msra.mxu0 %v365
    %390 = vmatpush.msra.mxu0 %v364
    %391 = vmatmul.f32.gmra.mxu0 %v373
    %v392 = vpop.f32.mrf.mxu0
    %v393 = vadd.f32 %v370, %v392
    %394 = vdwg.mxu0
    %v395 = vld [vmem:[%s10] sm:$0x1]
    %v396 = vadd.f32 %v393, %v395
    %v397 = vmax.f32 %v396, 0.0
    %vm398 = vcmp.ne.f32.partialorder %v396, %v396
    %v399 = vadd.f32 %v396, 0.0
    %v400 = vand.u32 2147483647, %v396
    %v401 = vsub.f32 0.0, %v400
    %v402 = vmul.f32 %v401, 1.442695
    %v403 = vpow.pop %v402
    %v404 = vadd.f32 %v403, 1.0
    %v405 = vlog2.pop %v404
    %v406 = vmul.f32 %v405, 0.6931472
    %v407 = vmul.f32 -0.5, %v403
    %v408 = vadd.f32 %v407, 1.0
    %v409 = vmul.f32 %v408, %v403
    %v410 = vand.u32 2147483647, %v403
    %vm411 = vcmp.lt.f32.partialorder %v410, 0.0004427343
    %v412 = vsel %vm411, %v409, %v406
    %v413 = vadd.f32 %v397, %v412
    %v414 = vsel %vm398, %v399, %v413
    %v415 = vsub.f32 %v414, 0.6931472
    %v416 = vld [vmem:[%s11] sm:$0xff]
    %v417 = vld [vmem:[%s11 + $0x8] sm:$0xff]
    %v418 = vld [vmem:[%s11 + $0x10] sm:$0xff]
    %v419 = vld [vmem:[%s11 + $0x18] sm:$0xff]
    %v420 = vld [vmem:[%s12] sm:$0x1]
    %v422 = vsel %vm372, %v415, 0
    %424 = vmatpush.msra.mxu0 0.0
    %425 = vmatpush.msra.mxu0 0.0
    %426 = vmatpush.msra.mxu0 0.0
    %427 = vmatpush.msra.mxu0 0.0
    %428 = vmatpush.msra.mxu0 0.0
    %429 = vmatpush.msra.mxu0 0.0
    %430 = vmatpush.msra.mxu0 0.0
    %431 = vmatpush.msra.mxu0 0.0
    %432 = vmatpush.msra.mxu0 0.0
    %433 = vmatpush.msra.mxu0 0.0
    %434 = vmatpush.msra.mxu0 0.0
    %435 = vmatpush.msra.mxu0 0.0
    %436 = vmatpush.msra.mxu0 %v419
    %437 = vmatpush.msra.mxu0 %v418
    %438 = vmatpush.msra.mxu0 %v417
    %439 = vmatpush.msra.mxu0 %v416
    %440 = vmatmul.f32.gmra.mxu0 %v422
    %v441 = vpop.f32.mrf.mxu0
    %v442 = vadd.f32 %v420, %v441
    %443 = vdwg.mxu0
    %vm444 = vcmask 57344
    %v445 = vsel %vm444, %v442, -inf
    %446 = vmax.xlane.f32.xlu0 %v445
    %v447 = vpop.xlane.xlu0 %446
    %v448 = vsub.f32 %v442, %v447
    %v449 = vmul.f32 %v448, 1.442695
    %v450 = vpow.pop %v449
    %v451 = vsel %vm444, %v450, 0.0
    %452 = vadd.xlane.f32.xlu0 %v451
    %v453 = vpop.xlane.xlu0 %452
    %v454 = vrcp.pop %v453
    %v455 = vmul.f32 %v450, %v454
    %v456 = vxor.u32 %v362, 2147483648
    %v457 = vmul.f32 %v456, 1.442695
    %v458 = vpow.pop %v457
    %v459 = vadd.f32 %v458, 1.0
    %v460 = vrcp.pop %v459
    %v461 = vmul.f32 %v459, %v460
    %v462 = vsub.f32 1.0, %v461
    %v463 = vmul.f32 %v460, %v462
    %v464 = vadd.f32 %v460, %v463
    %vm465 = vweird.f32 %v459
    %vm466 = vweird.f32 %v460
    %vm467 = vmor %vm465, %vm466
    %v468 = vsel %vm467, %v460, %v464
    %v469 = vand.u32 2147483647, %v459
    %vm470 = vcmp.eq.f32.partialorder %v469, 8.507059e+37
    %v471 = vand.u32 %v459, 2147483648
    %v472 = vor.u32 1.1754944e-38, %v471
    %v473 = vsel %vm470, %v472, %v468
    %v474 = vmul.f32 1.0, %v473
    %475 = vst [vmem:[#allocation4] sm:$0x1] 0.0
    %476 = vst.msk [vmem:[#allocation4] sm:$0x1] %vm444, %v455
    %478 = vrot.lane.b32.xlu0 %v474, 72
    %v479 = vpop.permute.xlu0 %478
    %vm481 = vcmask 65600
    %482 = vst.msk [vmem:[#allocation4] sm:$0x1] %vm481, %v479
    // Predicated region
    $region54: #{tpu_custom_call.1} parent=1 // pred_check
      _
    $region55: #{tpu_custom_call.1} parent=1 // pred_check_branch
      %484 = sbr.rel (0) target = $region57
    $region56: #{tpu_custom_call.1} parent=1 // pred_region
      %486 = vsyncadd [#allocation5], 0
      %s488 = sshll.u32 [#allocation4], 4
      %s489 = int_to_ptr.vmem [resolvable:$true] %s488
      %s490 = sshll.u32 %s13, 4
      %s491 = int_to_ptr.hbm [resolvable:$true] %s490
      %493 = dma.vmem_to_hbm [thread:$0]  %s489, 16, %s491, [#allocation5]
    $region57: #{tpu_custom_call.1} parent=1 // pred_fallthru
      _
    // Predicated region
    $region58: #{tpu_custom_call.1} parent=1 // pred_check
      _
    $region59: #{tpu_custom_call.1} parent=1 // pred_check_branch
      %495 = sbr.rel (0) target = $region61
    $region60: #{tpu_custom_call.1} parent=1 // pred_region
      %497 = dma.done [#allocation5], 16
    $region61: #{tpu_custom_call.1} parent=1 // pred_fallthru
      _
    %498 = vsyncpa [#allocation5], 1

</llo_original>
